<compile_context>
chip_gen: v7x
topology: tpu7x:2x2x1
jax: 0.10.0
libtpu: 0.0.40
codegen_flags: <defaults>
</compile_context>

<pallas_src>
import jax
import jax.numpy as jnp
from jax.experimental import pallas as pl
from jax.experimental.pallas import tpu as pltpu


def _round_up(n, m):
    return ((n + m - 1) // m) * m


def rbf_kernel(x_ref, rep_t_ref, rsq_ref, o_ref):
    """Squared distance to a tile of class representatives for a batch tile.

    x_ref:     (TB, Dp)  operand-dtype VMEM tile (rows of x)
    rep_t_ref: (Dp, TN)  operand-dtype reps tile, pre-transposed, pre-scaled by -2
    rsq_ref:   (1,  TN)  f32 precomputed ||r_c||^2 (from unscaled reps)
    o_ref:     (TB, TN)  output tile in the caller's dtype
    """
    x = x_ref[...]                                              # (TB, Dp)

    # ||x_b||^2 per row, accumulated in f32 regardless of operand dtype.
    xf = x.astype(jnp.float32)
    xsq = jnp.sum(xf * xf, axis=1, keepdims=True)               # (TB, 1)

    # MXU: x @ (-2 * reps)^T, f32 accumulation (bf16 operands take the fast
    # MXU path; f32 operands still accumulate in f32).
    xr = jnp.dot(x, rep_t_ref[...],
                 preferred_element_type=jnp.float32)            # (TB, TN)

    d = xsq + xr + rsq_ref[...]                                 # (TB, TN)
    # Exact distances are >= 0; clamp tiny negatives from cancellation.
    o_ref[...] = jnp.maximum(d, 0.0).astype(o_ref.dtype)


def rbf_output_layer(x, representatives, *, use_pallas=None):
    """JAX wrapper mirroring RBFOutputLayer.forward."""
    B, D = x.shape
    C, D2 = representatives.shape
    if D2 != D:
        raise ValueError("Incorrect RBF input")

    out_dtype = x.dtype

    # Tiny shapes: kernel launch + padding overhead is strictly slower than a
    # fused jnp expression.  (The demo below forces the Pallas path.)
    if use_pallas is None:
        use_pallas = (B * C * D) >= (1 << 18)
    if not use_pallas:
        xf = x.astype(jnp.float32)
        rf = representatives.astype(jnp.float32)
        return jnp.sum((xf[:, None, :] - rf[None, :, :]) ** 2,
                       axis=-1).astype(out_dtype)

    # Operand dtype for the MXU: keep the inputs' (promoted) float dtype so
    # bf16 inputs stay bf16; never force-upcast to f32.
    op_dtype = jnp.promote_types(x.dtype, representatives.dtype)
    if (not jnp.issubdtype(op_dtype, jnp.floating)) or op_dtype == jnp.float64:
        op_dtype = jnp.dtype(jnp.float32)
    op_dtype = jnp.dtype(op_dtype)
    op_bytes = op_dtype.itemsize
    out_bytes = jnp.dtype(out_dtype).itemsize

    # Lane/sublane-aligned padded extents.  Batch is padded only to a
    # multiple of 8 (<= 7 rows), NOT to a multiple of TB.
    Dp = _round_up(max(D, 1), 128)
    Cp = _round_up(max(C, 1), 128)
    Bp = _round_up(max(B, 1), 8)

    # --- Class tiling: fully resident reps when small, tiled otherwise. ---
    if Dp * Cp * op_bytes <= 8 * 1024 * 1024:
        TN = Cp                           # single class step, reps resident
    else:
        # Prefer 512/256-wide tiles (keeps the 256-wide MXU on v6e/v7x full);
        # 128 always divides Cp.
        TN = 512 if Cp % 512 == 0 else (256 if Cp % 256 == 0 else 128)
    nc = Cp // TN
    rep_bufs = 1 if nc == 1 else 2        # single-buffer resident reps

    # --- Batch tiling: >= 2 grid steps when possible (v7x megacore), within
    #     a conservative VMEM budget that is safe on all generations. ---
    TB = min(512, _round_up(pl.cdiv(Bp, 2), 8))

    def vmem_bytes(tb):
        x_b = 2 * tb * Dp * op_bytes            # double-buffered x tile
        rep_b = rep_bufs * Dp * TN * op_bytes   # reps tile
        rsq_b = rep_bufs * TN * 4               # ||r||^2 tile
        out_b = 2 * tb * TN * out_bytes         # double-buffered output tile
        return x_b + rep_b + rsq_b + out_b

    VMEM_BUDGET = 40 * 1024 * 1024              # fits v7x (64 MiB physical)
    while TB > 8 and vmem_bytes(TB) > VMEM_BUDGET:
        TB = _round_up(TB // 2, 8)
    nb = pl.cdiv(Bp, TB)

    vmem_limit = int(min(48 * 1024 * 1024,
                         max(32 * 1024 * 1024,
                             vmem_bytes(TB) + vmem_bytes(TB) // 4)))

    # --- Prepare operands (feature-dim zero pad kept; no TB-multiple batch
    #     pad; -2 folded into rep_t; rsq from the UNSCALED reps). ---
    x_op = x.astype(op_dtype)
    reps_op = representatives.astype(op_dtype)

    if (Bp, Dp) != (B, D):
        x_p = jnp.zeros((Bp, Dp), op_dtype).at[:B, :D].set(x_op)
    else:
        x_p = x_op

    rsq = jnp.zeros((1, Cp), jnp.float32).at[0, :C].set(
        jnp.sum(reps_op.astype(jnp.float32) ** 2, axis=1))
    rep_t = jnp.zeros((Dp, Cp), op_dtype).at[:D, :C].set(
        (reps_op * jnp.asarray(-2.0, op_dtype)).T)

    cost = pl.CostEstimate(
        flops=2 * Bp * Cp * Dp + 4 * Bp * Cp,
        transcendentals=0,
        bytes_accessed=int(x_p.size * op_bytes + rep_t.size * op_bytes
                           + rsq.size * 4 + Bp * Cp * out_bytes),
    )

    # Resident (index never changes) reps get a single pipeline buffer.
    rep_kwargs = {"pipeline_mode": pl.Buffered(1)} if nc == 1 else {}

    out = pl.pallas_call(
        rbf_kernel,
        out_shape=jax.ShapeDtypeStruct((Bp, Cp), out_dtype),
        grid=(nb, nc),
        in_specs=[
            pl.BlockSpec((TB, Dp), lambda i, j: (i, 0)),              # x tile
            pl.BlockSpec((Dp, TN), lambda i, j: (0, j), **rep_kwargs),  # reps^T
            pl.BlockSpec((1, TN), lambda i, j: (0, j), **rep_kwargs),   # ||r||^2
        ],
        out_specs=pl.BlockSpec((TB, TN), lambda i, j: (i, j)),
        compiler_params=pltpu.CompilerParams(
            dimension_semantics=("parallel", "parallel"),
            vmem_limit_bytes=vmem_limit,
        ),
        cost_estimate=cost,
    )(x_p, rep_t, rsq)

    return out[:B, :C]


if __name__ == "__main__":
    # Small shapes implied by the module: x is (batch, input_size),
    # representatives is (num_classes, input_size).
    batch = 8
    input_size = 32
    num_classes = 4

    key = jax.random.PRNGKey(0)
    kx, kr = jax.random.split(key)
    x = jax.random.normal(kx, (batch, input_size), dtype=jnp.float32)
    representatives = jax.random.normal(
        kr, (num_classes, input_size), dtype=jnp.float32
    )

    # Force the Pallas path so the kernel is exercised at demo shapes.
    out = rbf_output_layer(x, representatives, use_pallas=True)
    out = jax.block_until_ready(out)

    # Pure-JAX reference for sanity.
    ref = jnp.sum(
        (x[:, None, :] - representatives[None, :, :]) ** 2, axis=-1
    )
    assert out.shape == (batch, num_classes), out.shape
    assert jnp.allclose(out, ref, rtol=1e-3, atol=1e-3), "mismatch vs reference"

    print("KERNEL_OK")
</pallas_src>

<mosaic_0001>
module attributes {stable_mosaic.version = 11 : i64} {
  func.func @rbf_kernel(%arg0: i32, %arg1: i32, %arg2: memref<8x128xf32, #tpu.memory_space<vmem>>, %arg3: memref<128x128xf32, #tpu.memory_space<vmem>>, %arg4: memref<1x128xf32, #tpu.memory_space<vmem>>, %arg5: memref<8x128xf32, #tpu.memory_space<vmem>>) attributes {dimension_semantics = [#tpu.dimension_semantics<parallel>, #tpu.dimension_semantics<parallel>], iteration_bounds = array<i64: 1, 1>, scalar_prefetch = 0 : i64, scratch_operands = 0 : i64, tpu.core_type = #tpu.core_type<tc>, window_params = [{transform_indices = @transform_0, window_bounds = array<i64: 8, 128>}, {pipeline_mode = #tpu.pipeline_mode<synchronous>, transform_indices = @transform_1, window_bounds = array<i64: 128, 128>}, {pipeline_mode = #tpu.pipeline_mode<synchronous>, transform_indices = @transform_2, window_bounds = array<i64: 1, 128>}, {transform_indices = @transform_3, window_bounds = array<i64: 8, 128>}]} {
    %c0 = arith.constant 0 : index
    %c0_0 = arith.constant 0 : index
    %0 = vector.load %arg2[%c0, %c0_0] : memref<8x128xf32, #tpu.memory_space<vmem>>, vector<8x128xf32>
    %1 = arith.mulf %0, %0 : vector<8x128xf32>
    %cst = arith.constant dense<0.000000e+00> : vector<8xf32>
    %2 = vector.multi_reduction <add>, %1, %cst [1] : vector<8x128xf32> to vector<8xf32>
    %3 = vector.shape_cast %2 : vector<8xf32> to vector<8x1xf32>
    %c0_1 = arith.constant 0 : index
    %c0_2 = arith.constant 0 : index
    %4 = vector.load %arg3[%c0_1, %c0_2] : memref<128x128xf32, #tpu.memory_space<vmem>>, vector<128x128xf32>
    %cst_3 = arith.constant dense<0.000000e+00> : vector<8x128xf32>
    %5 = tpu.matmul %0, %4, %cst_3 {dimension_numbers = #tpu.dot_dimension_numbers<[1], [0], [0], [1], [0, 0, 1, 1], [], []>} : vector<8x128xf32>, vector<128x128xf32>, vector<8x128xf32> -> vector<8x128xf32>
    %6 = vector.broadcast %3 : vector<8x1xf32> to vector<8x128xf32>
    %7 = arith.addf %6, %5 : vector<8x128xf32>
    %c0_4 = arith.constant 0 : index
    %c0_5 = arith.constant 0 : index
    %8 = vector.load %arg4[%c0_4, %c0_5] : memref<1x128xf32, #tpu.memory_space<vmem>>, vector<1x128xf32>
    %9 = vector.broadcast %8 : vector<1x128xf32> to vector<8x128xf32>
    %10 = arith.addf %7, %9 : vector<8x128xf32>
    %cst_6 = arith.constant 0.000000e+00 : f32
    %11 = vector.broadcast %cst_6 : f32 to vector<8x128xf32>
    %12 = arith.maximumf %10, %11 : vector<8x128xf32>
    %c0_7 = arith.constant 0 : index
    %c0_8 = arith.constant 0 : index
    %13 = vector.load %arg5[%c0_7, %c0_8] : memref<8x128xf32, #tpu.memory_space<vmem>>, vector<8x128xf32>
    tpu.vector_store %arg5[%c0_7, %c0_8], %12 {strides = array<i32>} : memref<8x128xf32, #tpu.memory_space<vmem>>, vector<8x128xf32>,
    return
  }
  func.func @transform_0(%arg0: i32, %arg1: i32) -> (i32, i32) {
    %c0_i32 = arith.constant 0 : i32
    %c0_i32_0 = arith.constant 0 : i32
    return %arg0, %c0_i32 : i32, i32
  }
  func.func @transform_1(%arg0: i32, %arg1: i32) -> (i32, i32) {
    %c0_i32 = arith.constant 0 : i32
    %c0_i32_0 = arith.constant 0 : i32
    return %c0_i32, %arg1 : i32, i32
  }
  func.func @transform_2(%arg0: i32, %arg1: i32) -> (i32, i32) {
    %c0_i32 = arith.constant 0 : i32
    %c0_i32_0 = arith.constant 0 : i32
    return %c0_i32, %arg1 : i32, i32
  }
  func.func @transform_3(%arg0: i32, %arg1: i32) -> (i32, i32) {
    %c0_i32 = arith.constant 0 : i32
    return %arg0, %arg1 : i32, i32
  }
}

</mosaic_0001>

<llo_original>
// kernel: tpu_custom_call.1
$region0: #{tpu_custom_call.1}
  #allocation0 [shape = 'u32[]', space=smem, size = 0x4, offset = 0x4, fixed_abs, tag = 'smem constant byte address 0x4 - core index']
  #allocation1 [shape = 'u32[144,128]{1,0:T(1,128)}', space=vmem, size = 0x12000, scoped, tag = 'internal scratch']
  %s0 = inlined_call_operand.hbm [shape: f32[8,128], index: 0, kind: input, shape index: {}]
  %s1 = inlined_call_operand.hbm [shape: f32[128,128], index: 1, kind: input, shape index: {}]
  %s2 = inlined_call_operand.vmem [shape: f32[1,128], index: 2, kind: input, shape index: {}]
  %s3 = inlined_call_operand.hbm [shape: f32[8,128], index: 3, kind: output, shape index: {}]
  %s4 = sld [smem:[#allocation0]]
  $region30: #{tpu_custom_call.1} parent=0
    _
  %s6 = ssub.s32 1, %s4
  %s7 = scalar_select 0, %s6, %s4
  $region1: #{tpu_custom_call.1} parent=0
    #allocation2 [shape = 'u8[4096]{0}', space=vmem, size = 0x1000, scoped, tag = 'input window, operand 0, single buffered']
    #allocation3 [shape = 's32[1]{0}', space=sflag, size = 0x4, scoped, tag = 'scoped memory for tpu_custom_call.1']
    #allocation4 [shape = 's32[1]{0}', space=sflag, size = 0x4, scoped, tag = 'scoped memory for tpu_custom_call.1']
    #allocation5 [shape = 'u8[65536]{0}', space=vmem, size = 0x10000, scoped, tag = 'input window, operand 1, single buffered']
    #allocation6 [shape = 's32[1]{0}', space=sflag, size = 0x4, scoped, tag = 'scoped memory for tpu_custom_call.1']
    #allocation7 [shape = 'u8[4096]{0}', space=vmem, size = 0x1000, scoped, tag = 'output window, operand 0, single buffered']
    %8 = vsyncpa [#allocation3], 0
    %9 = vsyncpa [#allocation6], 0
    %10 = vsyncpa [#allocation4], 0
    // Predicated region
    $region2: #{tpu_custom_call.1} parent=1 // pred_check
      _
    $region3: #{tpu_custom_call.1} parent=1 // pred_check_branch
      %12 = sbr.rel (0) target = $region5
    $region4: #{tpu_custom_call.1} parent=1 // pred_region
      %s14 = ssub.s32 128, 128
      %15 = vsyncadd [#allocation3], %s14
      %s17 = sshll.u32 [#allocation2], 4
      %s18 = int_to_ptr.vmem [resolvable:$true] %s17
      %20 = dma.hbm_to_vmem [thread:$0]  %s0, 128, %s18, [#allocation3]
    $region5: #{tpu_custom_call.1} parent=1 // pred_fallthru
      _
    // Predicated region
    $region6: #{tpu_custom_call.1} parent=1 // pred_check
      _
    $region7: #{tpu_custom_call.1} parent=1 // pred_check_branch
      %22 = sbr.rel (0) target = $region9
    $region8: #{tpu_custom_call.1} parent=1 // pred_region
      %s24 = ssub.s32 2048, 2048
      %25 = vsyncadd [#allocation6], %s24
      %s26 = sshll.u32 [#allocation5], 4
      %s27 = int_to_ptr.vmem [resolvable:$true] %s26
      %32 = dma.hbm_to_vmem [thread:$0]  %s1, 2048, %s27, [#allocation6], 128, 128, 8
    $region9: #{tpu_custom_call.1} parent=1 // pred_fallthru
      _
    // Predicated region
    $region10: #{tpu_custom_call.1} parent=1 // pred_check
      _
    $region11: #{tpu_custom_call.1} parent=1 // pred_check_branch
      %34 = sbr.rel (0) target = $region13
    $region12: #{tpu_custom_call.1} parent=1 // pred_region
      _
    $region13: #{tpu_custom_call.1} parent=1 // pred_fallthru
      _
    // Predicated region
    $region14: #{tpu_custom_call.1} parent=1 // pred_check
      _
    $region15: #{tpu_custom_call.1} parent=1 // pred_check_branch
      %36 = sbr.rel (0) target = $region17
    $region16: #{tpu_custom_call.1} parent=1 // pred_region
      %37 = dma.done [#allocation3], 128
    $region17: #{tpu_custom_call.1} parent=1 // pred_fallthru
      _
    // Predicated region
    $region18: #{tpu_custom_call.1} parent=1 // pred_check
      _
    $region19: #{tpu_custom_call.1} parent=1 // pred_check_branch
      %39 = sbr.rel (0) target = $region21
    $region20: #{tpu_custom_call.1} parent=1 // pred_region
      %40 = dma.done [#allocation6], 2048
    $region21: #{tpu_custom_call.1} parent=1 // pred_fallthru
      _
    %v41 = vld [vmem:[#allocation2] sm:$0xff]
    %v42 = vmul.f32 %v41, %v41
    %43 = vadd.xlane.f32.xlu0 %v42
    %v44 = vpop.xlane.xlu0 %43
    %v45 = vld [vmem:[#allocation5] sm:$0xff]
    %v46 = vld [vmem:[#allocation5 + $0x8] sm:$0xff]
    %v47 = vld [vmem:[#allocation5 + $0x10] sm:$0xff]
    %v48 = vld [vmem:[#allocation5 + $0x18] sm:$0xff]
    %v49 = vld [vmem:[#allocation5 + $0x20] sm:$0xff]
    %v50 = vld [vmem:[#allocation5 + $0x28] sm:$0xff]
    %v51 = vld [vmem:[#allocation5 + $0x30] sm:$0xff]
    %v52 = vld [vmem:[#allocation5 + $0x38] sm:$0xff]
    %v53 = vld [vmem:[#allocation5 + $0x40] sm:$0xff]
    %v54 = vld [vmem:[#allocation5 + $0x48] sm:$0xff]
    %v55 = vld [vmem:[#allocation5 + $0x50] sm:$0xff]
    %v56 = vld [vmem:[#allocation5 + $0x58] sm:$0xff]
    %v57 = vld [vmem:[#allocation5 + $0x60] sm:$0xff]
    %v58 = vld [vmem:[#allocation5 + $0x68] sm:$0xff]
    %v59 = vld [vmem:[#allocation5 + $0x70] sm:$0xff]
    %v60 = vld [vmem:[#allocation5 + $0x78] sm:$0xff]
    %61 = vmatprep.subr.mxu0 0.0
    %62 = vmatpush1.msra.mxu0 %v45
    %63 = vmatprep.subr.mxu0 0.0
    %64 = vmatpush1.msra.mxu0 %v46
    %65 = vmatprep.subr.mxu0 0.0
    %66 = vmatpush1.msra.mxu0 %v47
    %67 = vmatprep.subr.mxu0 0.0
    %68 = vmatpush1.msra.mxu0 %v48
    %69 = vmatprep.subr.mxu0 0.0
    %70 = vmatpush1.msra.mxu0 %v49
    %71 = vmatprep.subr.mxu0 0.0
    %72 = vmatpush1.msra.mxu0 %v50
    %73 = vmatprep.subr.mxu0 0.0
    %74 = vmatpush1.msra.mxu0 %v51
    %75 = vmatprep.subr.mxu0 0.0
    %76 = vmatpush1.msra.mxu0 %v52
    %77 = vmatprep.subr.mxu0 0.0
    %78 = vmatpush1.msra.mxu0 %v53
    %79 = vmatprep.subr.mxu0 0.0
    %80 = vmatpush1.msra.mxu0 %v54
    %81 = vmatprep.subr.mxu0 0.0
    %82 = vmatpush1.msra.mxu0 %v55
    %83 = vmatprep.subr.mxu0 0.0
    %84 = vmatpush1.msra.mxu0 %v56
    %85 = vmatprep.subr.mxu0 0.0
    %86 = vmatpush1.msra.mxu0 %v57
    %87 = vmatprep.subr.mxu0 0.0
    %88 = vmatpush1.msra.mxu0 %v58
    %89 = vmatprep.subr.mxu0 0.0
    %90 = vmatpush1.msra.mxu0 %v59
    %91 = vmatprep.subr.mxu0 0.0
    %92 = vmatpush1.msra.mxu0 %v60
    %93 = vmatprep.subr.mxu0 0.0
    %94 = vmatpush1.msra.mxu0 0.0
    %95 = vmatprep.subr.mxu0 0.0
    %96 = vmatpush1.msra.mxu0 0.0
    %97 = vmatprep.subr.mxu0 0.0
    %98 = vmatpush1.msra.mxu0 0.0
    %99 = vmatprep.subr.mxu0 0.0
    %100 = vmatpush1.msra.mxu0 0.0
    %101 = vmatprep.subr.mxu0 0.0
    %102 = vmatpush1.msra.mxu0 0.0
    %103 = vmatprep.subr.mxu0 0.0
    %104 = vmatpush1.msra.mxu0 0.0
    %105 = vmatprep.subr.mxu0 0.0
    %106 = vmatpush1.msra.mxu0 0.0
    %107 = vmatprep.subr.mxu0 0.0
    %108 = vmatpush1.msra.mxu0 0.0
    %109 = vmatprep.subr.mxu0 0.0
    %110 = vmatpush1.msra.mxu0 0.0
    %111 = vmatprep.subr.mxu0 0.0
    %112 = vmatpush1.msra.mxu0 0.0
    %113 = vmatprep.subr.mxu0 0.0
    %114 = vmatpush1.msra.mxu0 0.0
    %115 = vmatprep.subr.mxu0 0.0
    %116 = vmatpush1.msra.mxu0 0.0
    %117 = vmatprep.subr.mxu0 0.0
    %118 = vmatpush1.msra.mxu0 0.0
    %119 = vmatprep.subr.mxu0 0.0
    %120 = vmatpush1.msra.mxu0 0.0
    %121 = vmatprep.subr.mxu0 0.0
    %122 = vmatpush1.msra.mxu0 0.0
    %123 = vmatprep.subr.mxu0 0.0
    %124 = vmatpush1.msra.mxu0 0.0
    %125 = vmatprep.mubr.f32.mxu0 0.0
    %126 = vmatmul.mubr.f32.gmra.mrb[0].mxu0 %v41
    %v127 = vpop.f32.mrb[0].mxu0
    %v128 = vadd.f32 0.0, %v127
    %v129 = vpop.f32.mrb[0].mxu0
    %130 = vdwg.mxu0
    %v131 = vadd.f32 %v44, %v128
    %v132 = vld [vmem:[%s2] sm:$0x1]
    %v134 = vlaneseq
    %v135 = vshrl.u32 %v134, 7
    %v136 = vsub.s32 0, %v135
    %v137 = vrot.slane %v132, %v136
    %v139 = vadd.f32 %v131, %v137
    %v140 = vmax.f32 %v139, 0.0
    %141 = vst [vmem:[#allocation7] sm:$0xff] %v140
    // Predicated region
    $region22: #{tpu_custom_call.1} parent=1 // pred_check
      _
    $region23: #{tpu_custom_call.1} parent=1 // pred_check_branch
      %143 = sbr.rel (0) target = $region25
    $region24: #{tpu_custom_call.1} parent=1 // pred_region
      %s145 = ssub.s32 128, 128
      %146 = vsyncadd [#allocation4], %s145
      %s148 = sshll.u32 [#allocation7], 4
      %s149 = int_to_ptr.vmem [resolvable:$true] %s148
      %151 = dma.vmem_to_hbm [thread:$0]  %s149, 128, %s3, [#allocation4]
    $region25: #{tpu_custom_call.1} parent=1 // pred_fallthru
      _
    // Predicated region
    $region26: #{tpu_custom_call.1} parent=1 // pred_check
      _
    $region27: #{tpu_custom_call.1} parent=1 // pred_check_branch
      %153 = sbr.rel (0) target = $region29
    $region28: #{tpu_custom_call.1} parent=1 // pred_region
      %154 = dma.done [#allocation4], 128
    $region29: #{tpu_custom_call.1} parent=1 // pred_fallthru
      _
    %155 = vsyncpa [#allocation3], 1
    %156 = vsyncpa [#allocation6], 1
    %157 = vsyncpa [#allocation4], 1

</llo_original>
